<compile_context>
chip_gen: v5e
topology: v5e:2x2
jax: 0.10.0
libtpu: 0.0.40
codegen_flags: <defaults>
</compile_context>

<pallas_src>
import jax
import jax.numpy as jnp
from jax.experimental import pallas as pl
from jax.experimental.pallas import tpu as pltpu


def _round_up(x, m):
    return (x + m - 1) // m * m


# -----------------------------------------------------------------------------
# Pallas kernel: fused  out = feat @ W^T + b  (bias add in the GEMM epilogue)
# -----------------------------------------------------------------------------
def _linear_bias_kernel(f_ref, w_ref, b_ref, o_ref):
    acc = jnp.dot(f_ref[...], w_ref[...], preferred_element_type=jnp.float32)
    o_ref[...] = acc + b_ref[...]          # (1, Np) bias broadcasts over rows


def linear_bias(feat, w_pad, b_pad, *, tm):
    """feat:(B,K) @ w_pad:(K,Np) + b_pad:(1,Np) -> (B,Np) float32.

    feat is consumed unpadded: its K dim is a full-array-dim block and the
    partial last M block (when tm does not divide B) is masked by Pallas.
    """
    B, K = feat.shape
    K2, Np = w_pad.shape
    assert K == K2
    assert tm % 8 == 0
    grid = (pl.cdiv(B, tm),)
    return pl.pallas_call(
        _linear_bias_kernel,
        out_shape=jax.ShapeDtypeStruct((B, Np), jnp.float32),
        grid=grid,
        in_specs=[
            pl.BlockSpec((tm, K), lambda i: (i, 0)),    # activation rows
            pl.BlockSpec((K, Np), lambda i: (0, 0)),    # full pre-padded W^T
            pl.BlockSpec((1, Np), lambda i: (0, 0)),    # full pre-padded bias
        ],
        out_specs=pl.BlockSpec((tm, Np), lambda i: (i, 0)),
        compiler_params=pltpu.CompilerParams(
            dimension_semantics=("parallel",)),
    )(feat, w_pad, b_pad)


def _choose_tm(B, *, tm_max=2048, split_threshold=64):
    """Pick the M tile: one fat block for tiny B, >=2 grid steps otherwise."""
    Mp = _round_up(max(B, 1), 8)
    if B < split_threshold:
        return min(Mp, tm_max)             # single fat block, grid=(1,)
    # >= 2 grid steps so a 2-TensorCore chip (v7x) can shard the M axis;
    # on v5e/v6e this only adds one ~0.35 us grid step.
    return min(tm_max, _round_up(pl.cdiv(Mp, 2), 8))


# -----------------------------------------------------------------------------
# ShapePredictor parameters & forward
# -----------------------------------------------------------------------------
def make_shape_predictor_params(key, nz_feat, num_verts):
    out_dim = num_verts * 3
    kw, kb = jax.random.split(key)
    # pred_layer.weight.data.normal_(0, 0.0001)  -- as in the module
    w = 1e-4 * jax.random.normal(kw, (out_dim, nz_feat), jnp.float32)
    # nn.Linear default bias init: U(-1/sqrt(fan_in), 1/sqrt(fan_in))
    bound = 1.0 / (nz_feat ** 0.5)
    b = jax.random.uniform(kb, (out_dim,), jnp.float32, -bound, bound)

    # Pre-pad the constant operands ONCE: only the output (lane) axis is
    # padded to 128; K stays at its true size.
    Np = _round_up(out_dim, 128)
    w_pad = jnp.zeros((nz_feat, Np), jnp.float32).at[:, :out_dim].set(w.T)
    b_pad = jnp.zeros((1, Np), jnp.float32).at[0, :out_dim].set(b)
    return dict(w=w, b=b, w_pad=w_pad, b_pad=b_pad)


def shape_predictor_forward(params, feat):
    """Pallas equivalent of ShapePredictor.forward: (B, nz_feat) -> (B, V, 3)."""
    w_pad, b_pad = params["w_pad"], params["b_pad"]
    out_dim = params["b"].shape[0]
    B = feat.shape[0]

    tm = _choose_tm(B)
    out = linear_bias(feat.astype(jnp.float32), w_pad, b_pad, tm=tm)

    # Cheap lane-slice of the 128-wide slab + the module's .view(B, -1, 3).
    delta_v = out[:, :out_dim].reshape(B, out_dim // 3, 3)
    return delta_v


# -----------------------------------------------------------------------------
if __name__ == "__main__":
    key = jax.random.PRNGKey(0)
    k_param, k_feat = jax.random.split(key)

    B = 2
    nz_feat = 100
    num_verts = 42  # stands in for the sphere OFF mesh vertex count

    params = make_shape_predictor_params(k_param, nz_feat, num_verts)
    feat = jax.random.normal(k_feat, (B, nz_feat), jnp.float32)

    fwd = jax.jit(shape_predictor_forward)
    delta_v = fwd(params, feat)
    jax.block_until_ready(delta_v)

    assert delta_v.shape == (B, num_verts, 3)

    # Correctness check against the plain-JAX reference of nn.Linear + view.
    ref = (feat @ params["w"].T + params["b"]).reshape(B, num_verts, 3)
    assert bool(jnp.allclose(delta_v, ref, atol=1e-5, rtol=1e-5))

    print("KERNEL_OK")
</pallas_src>

<mosaic_0001>
module attributes {stable_mosaic.version = 11 : i64} {
  func.func @_linear_bias_kernel(%arg0: i32, %arg1: memref<8x100xf32, #tpu.memory_space<vmem>>, %arg2: memref<100x128xf32, #tpu.memory_space<vmem>>, %arg3: memref<1x128xf32, #tpu.memory_space<vmem>>, %arg4: memref<8x128xf32, #tpu.memory_space<vmem>>) attributes {dimension_semantics = [#tpu.dimension_semantics<parallel>], iteration_bounds = array<i64: 1>, scalar_prefetch = 0 : i64, scratch_operands = 0 : i64, tpu.core_type = #tpu.core_type<tc>, window_params = [{transform_indices = @transform_0, window_bounds = array<i64: 8, 100>}, {pipeline_mode = #tpu.pipeline_mode<synchronous>, transform_indices = @transform_1, window_bounds = array<i64: 100, 128>}, {pipeline_mode = #tpu.pipeline_mode<synchronous>, transform_indices = @transform_2, window_bounds = array<i64: 1, 128>}, {transform_indices = @transform_3, window_bounds = array<i64: 8, 128>}]} {
    %c0 = arith.constant 0 : index
    %c0_0 = arith.constant 0 : index
    %0 = vector.load %arg1[%c0, %c0_0] : memref<8x100xf32, #tpu.memory_space<vmem>>, vector<8x100xf32>
    %c0_1 = arith.constant 0 : index
    %c0_2 = arith.constant 0 : index
    %1 = vector.load %arg2[%c0_1, %c0_2] : memref<100x128xf32, #tpu.memory_space<vmem>>, vector<100x128xf32>
    %cst = arith.constant dense<0.000000e+00> : vector<8x128xf32>
    %2 = tpu.matmul %0, %1, %cst {dimension_numbers = #tpu.dot_dimension_numbers<[1], [0], [0], [1], [0, 0, 1, 1], [], []>} : vector<8x100xf32>, vector<100x128xf32>, vector<8x128xf32> -> vector<8x128xf32>
    %c0_3 = arith.constant 0 : index
    %c0_4 = arith.constant 0 : index
    %3 = vector.load %arg3[%c0_3, %c0_4] : memref<1x128xf32, #tpu.memory_space<vmem>>, vector<1x128xf32>
    %4 = vector.broadcast %3 : vector<1x128xf32> to vector<8x128xf32>
    %5 = arith.addf %2, %4 : vector<8x128xf32>
    %c0_5 = arith.constant 0 : index
    %c0_6 = arith.constant 0 : index
    %6 = vector.load %arg4[%c0_5, %c0_6] : memref<8x128xf32, #tpu.memory_space<vmem>>, vector<8x128xf32>
    tpu.vector_store %arg4[%c0_5, %c0_6], %5 {strides = array<i32>} : memref<8x128xf32, #tpu.memory_space<vmem>>, vector<8x128xf32>,
    return
  }
  func.func @transform_0(%arg0: i32) -> (i32, i32) {
    %c0_i32 = arith.constant 0 : i32
    %c0_i32_0 = arith.constant 0 : i32
    return %arg0, %c0_i32 : i32, i32
  }
  func.func @transform_1(%arg0: i32) -> (i32, i32) {
    %c0_i32 = arith.constant 0 : i32
    %c0_i32_0 = arith.constant 0 : i32
    %c0_i32_1 = arith.constant 0 : i32
    return %c0_i32, %c0_i32_0 : i32, i32
  }
  func.func @transform_2(%arg0: i32) -> (i32, i32) {
    %c0_i32 = arith.constant 0 : i32
    %c0_i32_0 = arith.constant 0 : i32
    %c0_i32_1 = arith.constant 0 : i32
    return %c0_i32, %c0_i32_0 : i32, i32
  }
  func.func @transform_3(%arg0: i32) -> (i32, i32) {
    %c0_i32 = arith.constant 0 : i32
    %c0_i32_0 = arith.constant 0 : i32
    return %arg0, %c0_i32 : i32, i32
  }
}

</mosaic_0001>

<llo_original>
// kernel: shape_predictor_forward.1
$region0: #{shape_predictor_forward.1}
  #allocation0 [shape = 'u32[]', space=smem, size = 0x4, offset = 0x4, fixed_abs, tag = 'smem constant byte address 0x4 - core index']
  #allocation1 [shape = 'u32[72,128]{1,0:T(1,128)}', space=vmem, size = 0x9000, scoped, tag = 'internal scratch']
  %s0 = inlined_call_operand.hbm [shape: f32[2,100], index: 0, kind: input, shape index: {}]
  %s1 = inlined_call_operand.hbm [shape: f32[100,128], index: 1, kind: input, shape index: {}]
  %s2 = inlined_call_operand.hbm [shape: f32[1,128], index: 2, kind: input, shape index: {}]
  %s3 = inlined_call_operand.vmem [shape: f32[2,128], index: 3, kind: output, shape index: {}]
  %s4 = sld [smem:[#allocation0]]
  $region64: #{shape_predictor_forward.1} parent=0
    _
  %s6 = ssub.s32 1, %s4
  %s7 = scalar_select 0, %s6, %s4
  $region1: #{shape_predictor_forward.1} parent=0
    #allocation2 [shape = 'u8[4096]{0}', space=vmem, size = 0x1000, scoped, tag = 'input window, operand 0, single buffered']
    #allocation3 [shape = 's32[1]{0}', space=sflag, size = 0x4, scoped, tag = 'scoped memory for shape_predictor_forward.1']
    #allocation4 [shape = 'u8[53248]{0}', space=vmem, size = 0xd000, scoped, tag = 'input window, operand 1, single buffered']
    #allocation5 [shape = 's32[1]{0}', space=sflag, size = 0x4, scoped, tag = 'scoped memory for shape_predictor_forward.1']
    #allocation6 [shape = 'u8[512]{0}', space=vmem, size = 0x400, scoped, tag = 'input window, operand 2, single buffered']
    #allocation7 [shape = 'u8[4096]{0}', space=vmem, size = 0x1000, scoped, tag = 'output window, operand 0, single buffered']
    %8 = vsyncpa [#allocation3], 0
    %9 = vsyncpa [#allocation5], 0
    // Predicated region
    $region2: #{shape_predictor_forward.1} parent=1 // pred_check
      _
    $region3: #{shape_predictor_forward.1} parent=1 // pred_check_branch
      %11 = sbr.rel (0) target = $region5
    $region4: #{shape_predictor_forward.1} parent=1 // pred_region
      %13 = vsyncadd [#allocation3], 96
      %s14 = sshll.u32 %s0, 4
      %s15 = int_to_ptr.hbm [resolvable:$true] %s14
      %s16 = sshll.u32 [#allocation2], 4
      %s17 = int_to_ptr.vmem [resolvable:$true] %s16
      %22 = dma.hbm_to_vmem [thread:$0]  %s15, 32, %s17, [#allocation3], 32, 32, 2
    $region5: #{shape_predictor_forward.1} parent=1 // pred_fallthru
      _
    // Predicated region
    $region6: #{shape_predictor_forward.1} parent=1 // pred_check
      _
    $region7: #{shape_predictor_forward.1} parent=1 // pred_check_branch
      %24 = sbr.rel (0) target = $region9
    $region8: #{shape_predictor_forward.1} parent=1 // pred_region
      %26 = vsyncadd [#allocation5], 0
      %s27 = sshll.u32 %s1, 4
      %s28 = int_to_ptr.hbm [resolvable:$true] %s27
      %s29 = sshll.u32 [#allocation4], 4
      %s30 = int_to_ptr.vmem [resolvable:$true] %s29
      %35 = dma.hbm_to_vmem [thread:$0]  %s28, 1664, %s30, [#allocation5], 128, 128, 8
    $region9: #{shape_predictor_forward.1} parent=1 // pred_fallthru
      _
    // Predicated region
    $region10: #{shape_predictor_forward.1} parent=1 // pred_check
      _
    $region11: #{shape_predictor_forward.1} parent=1 // pred_check_branch
      %37 = sbr.rel (0) target = $region13
    $region12: #{shape_predictor_forward.1} parent=1 // pred_region
      %39 = vsyncadd [#allocation5], 0
      %s41 = sshll.u32 %s2, 4
      %s42 = int_to_ptr.hbm [resolvable:$true] %s41
      %s43 = sshll.u32 [#allocation6], 4
      %s44 = int_to_ptr.vmem [resolvable:$true] %s43
      %46 = dma.hbm_to_vmem [thread:$0]  %s42, 16, %s44, [#allocation5]
    $region13: #{shape_predictor_forward.1} parent=1 // pred_fallthru
      _
    // Predicated region
    $region14: #{shape_predictor_forward.1} parent=1 // pred_check
      _
    $region15: #{shape_predictor_forward.1} parent=1 // pred_check_branch
      %48 = sbr.rel (0) target = $region17
    $region16: #{shape_predictor_forward.1} parent=1 // pred_region
      %50 = dma.done [#allocation3], 128
    $region17: #{shape_predictor_forward.1} parent=1 // pred_fallthru
      _
    // Predicated region
    $region18: #{shape_predictor_forward.1} parent=1 // pred_check
      _
    $region19: #{shape_predictor_forward.1} parent=1 // pred_check_branch
      %52 = sbr.rel (0) target = $region21
    $region20: #{shape_predictor_forward.1} parent=1 // pred_region
      %54 = dma.done [#allocation5], 1664
    $region21: #{shape_predictor_forward.1} parent=1 // pred_fallthru
      _
    // Predicated region
    $region22: #{shape_predictor_forward.1} parent=1 // pred_check
      _
    $region23: #{shape_predictor_forward.1} parent=1 // pred_check_branch
      %56 = sbr.rel (0) target = $region25
    $region24: #{shape_predictor_forward.1} parent=1 // pred_region
      %58 = dma.done [#allocation5], 16
    $region25: #{shape_predictor_forward.1} parent=1 // pred_fallthru
      _
    %v59 = vld [vmem:[#allocation2] sm:$0xff]
    %v60 = vld [vmem:[#allocation4] sm:$0xff]
    %v61 = vld [vmem:[#allocation4 + $0x8] sm:$0xff]
    %v62 = vld [vmem:[#allocation4 + $0x10] sm:$0xff]
    %v63 = vld [vmem:[#allocation4 + $0x18] sm:$0xff]
    %v64 = vld [vmem:[#allocation4 + $0x20] sm:$0xff]
    %v65 = vld [vmem:[#allocation4 + $0x28] sm:$0xff]
    %v66 = vld [vmem:[#allocation4 + $0x30] sm:$0xff]
    %v67 = vld [vmem:[#allocation4 + $0x38] sm:$0xff]
    %v68 = vld [vmem:[#allocation4 + $0x40] sm:$0xff]
    %v69 = vld [vmem:[#allocation4 + $0x48] sm:$0xff]
    %v70 = vld [vmem:[#allocation4 + $0x50] sm:$0xff]
    %v71 = vld [vmem:[#allocation4 + $0x58] sm:$0xff]
    %v72 = vld [vmem:[#allocation4 + $0x60] sm:$0xf]
    %v73 = vld [vmem:[#allocation6] sm:$0x1]
    %v75 = vperm.slane %v73, 0
    %vm77 = vcmask 818176
    %v79 = vsel %vm77, %v59, 0
    %vm81 = vcmask 1043456
    %v83 = vsel %vm81, %v72, 0
    %85 = vmatpush.msra.mxu0 0.0
    %86 = vmatpush.msra.mxu0 0.0
    %87 = vmatpush.msra.mxu0 0.0
    %88 = vmatpush.msra.mxu0 %v83
    %89 = vmatpush.msra.mxu0 %v71
    %90 = vmatpush.msra.mxu0 %v70
    %91 = vmatpush.msra.mxu0 %v69
    %92 = vmatpush.msra.mxu0 %v68
    %93 = vmatpush.msra.mxu0 %v67
    %94 = vmatpush.msra.mxu0 %v66
    %95 = vmatpush.msra.mxu0 %v65
    %96 = vmatpush.msra.mxu0 %v64
    %97 = vmatpush.msra.mxu0 %v63
    %98 = vmatpush.msra.mxu0 %v62
    %99 = vmatpush.msra.mxu0 %v61
    %100 = vmatpush.msra.mxu0 %v60
    %101 = vmatmul.f32.gmra.mxu0 %v79
    %v102 = vpop.f32.mrf.mxu0
    %v103 = vadd.f32 %v75, %v102
    %104 = vdwg.mxu0
    %105 = vst [vmem:[#allocation7] sm:$0xff] %v103
    // Predicated region
    $region26: #{shape_predictor_forward.1} parent=1 // pred_check
      _
    $region27: #{shape_predictor_forward.1} parent=1 // pred_check_branch
      %107 = sbr.rel (0) target = $region29
    $region28: #{shape_predictor_forward.1} parent=1 // pred_region
      // Predicated region
      $region30: #{shape_predictor_forward.1} parent=28 // pred_check
        _
      $region31: #{shape_predictor_forward.1} parent=28 // pred_check_branch
        %109 = sbr.rel (0) target = $region33
      $region32: #{shape_predictor_forward.1} parent=28 // pred_region
        // Predicated region
        $region34: #{shape_predictor_forward.1} parent=32 // pred_check
          _
        $region35: #{shape_predictor_forward.1} parent=32 // pred_check_branch
          %111 = sbr.rel target = $region37
        $region36: #{shape_predictor_forward.1} parent=32 // pred_region
          // Predicated region
          $region49: #{shape_predictor_forward.1} parent=36 // pred_check
            _
          $region50: #{shape_predictor_forward.1} parent=36 // pred_check_branch
            %127 = sbr.rel (0) target = $region52
          $region51: #{shape_predictor_forward.1} parent=36 // pred_region
            %s129 = ssub.s32 4, 1
            loop: start=0, step=1, limit=1
            $region53: #{shape_predictor_forward.1} parent=51 // loop_pre_header
              _
            $region54: #{shape_predictor_forward.1} parent=51 // loop_header
              %s131 = sphi 0, %s135
              %p132 = scmp.ge.s32.totalorder %s131, 1
              %s136 = sphi [#allocation7], [#allocation7]
              %s137 = sphi %s3, %s3
            $region55: #{shape_predictor_forward.1} parent=51 // loop_header_branch
              %134 = sbr.rel (%p132) target = $region59
            $region56: #{shape_predictor_forward.1} parent=51 // loop_body
              %v138 = vld [vmem:[%s136] sm:%s129]
              %139 = vst [vmem:[%s137] sm:%s129] %v138
            $region57: #{shape_predictor_forward.1} parent=51 // loop_footer
              %s135 = sadd.s32 1, %s131
            $region58: #{shape_predictor_forward.1} parent=51 // loop_footer_branch
              %130 = sbr.rel target = $region54
            $region59: #{shape_predictor_forward.1} parent=51 // loop_exit
              _
          $region52: #{shape_predictor_forward.1} parent=36 // pred_fallthru
            _
        $region37: #{shape_predictor_forward.1} parent=32 // pred_fallthru
          _
        // Predicated region
        $region38: #{shape_predictor_forward.1} parent=32 // pred_check
          _
        $region39: #{shape_predictor_forward.1} parent=32 // pred_check_branch
          %113 = sbr.rel (0) target = $region41
        $region40: #{shape_predictor_forward.1} parent=32 // pred_region
          %s115 = ssub.s32 4, 1
          loop: start=0, step=1, limit=1
          $region42: #{shape_predictor_forward.1} parent=40 // loop_pre_header
            _
          $region43: #{shape_predictor_forward.1} parent=40 // loop_header
            %s117 = sphi 0, %s121
            %p118 = scmp.ge.s32.totalorder %s117, 1
            %s122 = sphi [#allocation7], [#allocation7]
            %s123 = sphi %s3, %s3
          $region44: #{shape_predictor_forward.1} parent=40 // loop_header_branch
            %120 = sbr.rel (%p118) target = $region48
          $region45: #{shape_predictor_forward.1} parent=40 // loop_body
            %v124 = vld [vmem:[%s122] sm:%s115]
            %125 = vst [vmem:[%s123] sm:%s115] %v124
          $region46: #{shape_predictor_forward.1} parent=40 // loop_footer
            %s121 = sadd.s32 1, %s117
          $region47: #{shape_predictor_forward.1} parent=40 // loop_footer_branch
            %116 = sbr.rel target = $region43
          $region48: #{shape_predictor_forward.1} parent=40 // loop_exit
            _
        $region41: #{shape_predictor_forward.1} parent=32 // pred_fallthru
          _
      $region33: #{shape_predictor_forward.1} parent=28 // pred_fallthru
        _
      %140 = vnop
    $region29: #{shape_predictor_forward.1} parent=1 // pred_fallthru
      _
    // Predicated region
    $region60: #{shape_predictor_forward.1} parent=1 // pred_check
      _
    $region61: #{shape_predictor_forward.1} parent=1 // pred_check_branch
      %142 = sbr.rel (0) target = $region63
    $region62: #{shape_predictor_forward.1} parent=1 // pred_region
      _
    $region63: #{shape_predictor_forward.1} parent=1 // pred_fallthru
      _
    %143 = vsyncpa [#allocation3], 1
    %144 = vsyncpa [#allocation5], 1

</llo_original>
